<compile_context>
chip_gen: v7x
topology: tpu7x:2x2x1
jax: 0.10.0
libtpu: 0.0.40
codegen_flags: <defaults>
</compile_context>

<pallas_src>
import jax
import jax.numpy as jnp
from jax.experimental import pallas as pl
from jax.experimental.pallas import tpu as pltpu

LANE = 128
SUBLANE = 8
# Padded weight (+ bias) at or below this stays fully resident in VMEM.
_RESIDENT_BYTES = 4 * 1024 * 1024


def _round_up(x, m):
    return (x + m - 1) // m * m


def _linear_kernel(x_ref, w_ref, b_ref, o_ref):
    # x_ref: (tm, K), w_ref: (K, n_blk), b_ref: (1, n_blk), o_ref: (tm, n_blk)
    # Canonical (m,k)x(k,n) MXU matmul with f32 accumulation; bias broadcast-add.
    acc = jnp.dot(x_ref[...], w_ref[...], preferred_element_type=jnp.float32)
    o_ref[...] = (acc + b_ref[...]).astype(o_ref.dtype)


def prep_feature_mapper_params(weight, bias):
    """One-time parameter prep (call at init, NOT per forward pass).

    weight: [out_dim, in_dim]  (PyTorch nn.Linear convention)
    bias:   [out_dim]
    Returns (w_t, b_row, out_dim):
      w_t   [in_dim, Np]  transposed + (optionally) lane-padded, canonical (k, n)
      b_row [1, Np]
    """
    out_dim, in_dim = weight.shape
    assert bias.shape == (out_dim,)
    # Lane-dense padding only pays off for out_dim >= 128; tiny out_dim keeps
    # the full-dim block (legal) and avoids write amplification + slice copy.
    Np = _round_up(out_dim, LANE) if out_dim >= LANE else out_dim
    w_t = weight.T  # one-time transpose at init (free per call)
    b_row = bias.reshape(1, out_dim)
    if Np != out_dim:
        w_t = jnp.pad(w_t, ((0, 0), (0, Np - out_dim)))
        b_row = jnp.pad(b_row, ((0, 0), (0, Np - out_dim)))
    return w_t, b_row, out_dim


def feature_mapper(x, w_t, b_row, out_dim):
    """y = x @ weight.T + bias, with params prepped by prep_feature_mapper_params."""
    B, in_dim = x.shape
    K, Np = w_t.shape
    assert K == in_dim and b_row.shape == (1, Np)
    itemsize = x.dtype.itemsize

    # --- M tiling (sublane axis) -------------------------------------------
    if B >= 256:
        tm = 256
    elif B >= 128:
        tm = 128
    else:
        tm = _round_up(B, SUBLANE)
    Mp = _round_up(B, tm)
    xp = x if Mp == B else jnp.pad(x, ((0, Mp - B), (0, 0)))

    weight_bytes = (K * Np + Np) * itemsize
    x_bytes = Mp * K * itemsize
    out_bytes = Mp * Np * itemsize

    if Np < LANE or weight_bytes <= _RESIDENT_BYTES:
        # ---- weight-resident path: 1-D grid over M; constant block index means
        # the weight/bias are DMA'd exactly once and stay in VMEM while x and
        # the output stream.
        # TODO(synk): use pipeline_mode=pl.Buffered(1) on weight/bias to halve
        # their VMEM footprint once single-buffering is needed (v7x, big K).
        # TODO(synk): split K with an f32 VMEM accumulator if a huge in_dim
        # pushes the resident weight past the VMEM budget.
        grid = (Mp // tm,)
        in_specs = [
            pl.BlockSpec((tm, K), lambda i: (i, 0)),   # x streams per M tile
            pl.BlockSpec((K, Np), lambda i: (0, 0)),   # weight resident
            pl.BlockSpec((1, Np), lambda i: (0, 0)),   # bias resident
        ]
        out_specs = pl.BlockSpec((tm, Np), lambda i: (i, 0))
        dim_sem = ("parallel",)
        bytes_accessed = x_bytes + weight_bytes + out_bytes
    else:
        # ---- tiled path (large weight): 2-D grid; the larger operand owns the
        # OUTER axis so it is streamed exactly once, the smaller one is
        # re-streamed per outer tile (and duplicated across v7x cores).
        tn = 256 if Np % 256 == 0 else LANE
        m_tiles, n_tiles = Mp // tm, Np // tn
        if weight_bytes >= x_bytes:
            grid = (n_tiles, m_tiles)  # N outer: weight fetched once, x refetched
            in_specs = [
                pl.BlockSpec((tm, K), lambda j, i: (i, 0)),
                pl.BlockSpec((K, tn), lambda j, i: (0, j)),
                pl.BlockSpec((1, tn), lambda j, i: (0, j)),
            ]
            out_specs = pl.BlockSpec((tm, tn), lambda j, i: (i, j))
            bytes_accessed = n_tiles * x_bytes + weight_bytes + out_bytes
        else:
            grid = (m_tiles, n_tiles)  # M outer: x fetched once, weight refetched
            in_specs = [
                pl.BlockSpec((tm, K), lambda i, j: (i, 0)),
                pl.BlockSpec((K, tn), lambda i, j: (0, j)),
                pl.BlockSpec((1, tn), lambda i, j: (0, j)),
            ]
            out_specs = pl.BlockSpec((tm, tn), lambda i, j: (i, j))
            bytes_accessed = x_bytes + m_tiles * weight_bytes + out_bytes
        dim_sem = ("parallel", "parallel")

    cost = pl.CostEstimate(
        flops=2 * Mp * K * Np,
        transcendentals=0,
        bytes_accessed=int(bytes_accessed),
    )

    out_padded = pl.pallas_call(
        _linear_kernel,
        out_shape=jax.ShapeDtypeStruct((Mp, Np), x.dtype),
        grid_spec=pltpu.PrefetchScalarGridSpec(
            num_scalar_prefetch=0,
            grid=grid,
            in_specs=in_specs,
            out_specs=out_specs,
        ),
        compiler_params=pltpu.CompilerParams(
            dimension_semantics=dim_sem,
            # Safe on all generations (v7x physical VMEM is only 64 MiB) and
            # well above what these tiles need; raise on v5e/v6e for huge K.
            vmem_limit_bytes=32 * 1024 * 1024,
        ),
        cost_estimate=cost,
    )(xp, w_t, b_row)

    if Mp != B or Np != out_dim:
        return out_padded[:B, :out_dim]
    return out_padded


if __name__ == "__main__":
    # Small shapes consistent with FeatureMapper(input_dim=32, output_dim=16).
    batch, input_dim, output_dim = 8, 32, 16

    key = jax.random.PRNGKey(0)
    kx, kw, kb = jax.random.split(key, 3)

    x = jax.random.normal(kx, (batch, input_dim), dtype=jnp.float32)

    # Deterministic init mimicking torch.nn.Linear default: U(-1/sqrt(in), 1/sqrt(in)).
    bound = 1.0 / jnp.sqrt(jnp.float32(input_dim))
    weight = jax.random.uniform(kw, (output_dim, input_dim),
                                minval=-bound, maxval=bound, dtype=jnp.float32)
    bias = jax.random.uniform(kb, (output_dim,),
                              minval=-bound, maxval=bound, dtype=jnp.float32)

    # One-time parameter prep (transpose/pad happens here, not per call).
    w_t, b_row, out_dim = prep_feature_mapper_params(weight, bias)

    out = feature_mapper(x, w_t, b_row, out_dim)
    jax.block_until_ready(out)

    # Reference check against plain JAX (same semantics as torch Linear).
    ref = x @ weight.T + bias
    assert out.shape == (batch, output_dim)
    assert jnp.allclose(out, ref, atol=1e-5, rtol=1e-5)

    print("KERNEL_OK")
</pallas_src>

<mosaic_0001>
module attributes {stable_mosaic.version = 11 : i64} {
  func.func @_linear_kernel(%arg0: i32, %arg1: memref<8x32xf32, #tpu.memory_space<vmem>>, %arg2: memref<32x16xf32, #tpu.memory_space<vmem>>, %arg3: memref<1x16xf32, #tpu.memory_space<vmem>>, %arg4: memref<8x16xf32, #tpu.memory_space<vmem>>) attributes {dimension_semantics = [#tpu.dimension_semantics<parallel>], iteration_bounds = array<i64: 1>, scalar_prefetch = 0 : i64, scratch_operands = 0 : i64, tpu.core_type = #tpu.core_type<tc>, window_params = [{transform_indices = @transform_0, window_bounds = array<i64: 8, 32>}, {pipeline_mode = #tpu.pipeline_mode<synchronous>, transform_indices = @transform_1, window_bounds = array<i64: 32, 16>}, {pipeline_mode = #tpu.pipeline_mode<synchronous>, transform_indices = @transform_2, window_bounds = array<i64: 1, 16>}, {transform_indices = @transform_3, window_bounds = array<i64: 8, 16>}]} {
    %c0 = arith.constant 0 : index
    %c0_0 = arith.constant 0 : index
    %0 = vector.load %arg1[%c0, %c0_0] : memref<8x32xf32, #tpu.memory_space<vmem>>, vector<8x32xf32>
    %c0_1 = arith.constant 0 : index
    %c0_2 = arith.constant 0 : index
    %1 = vector.load %arg2[%c0_1, %c0_2] : memref<32x16xf32, #tpu.memory_space<vmem>>, vector<32x16xf32>
    %cst = arith.constant dense<0.000000e+00> : vector<8x16xf32>
    %2 = tpu.matmul %0, %1, %cst {dimension_numbers = #tpu.dot_dimension_numbers<[1], [0], [0], [1], [0, 0, 1, 1], [], []>} : vector<8x32xf32>, vector<32x16xf32>, vector<8x16xf32> -> vector<8x16xf32>
    %c0_3 = arith.constant 0 : index
    %c0_4 = arith.constant 0 : index
    %3 = vector.load %arg3[%c0_3, %c0_4] : memref<1x16xf32, #tpu.memory_space<vmem>>, vector<1x16xf32>
    %4 = vector.broadcast %3 : vector<1x16xf32> to vector<8x16xf32>
    %5 = arith.addf %2, %4 : vector<8x16xf32>
    %c0_5 = arith.constant 0 : index
    %c0_6 = arith.constant 0 : index
    %6 = vector.load %arg4[%c0_5, %c0_6] : memref<8x16xf32, #tpu.memory_space<vmem>>, vector<8x16xf32>
    tpu.vector_store %arg4[%c0_5, %c0_6], %5 {strides = array<i32>} : memref<8x16xf32, #tpu.memory_space<vmem>>, vector<8x16xf32>,
    return
  }
  func.func @transform_0(%arg0: i32) -> (i32, i32) {
    %c0_i32 = arith.constant 0 : i32
    %c0_i32_0 = arith.constant 0 : i32
    return %arg0, %c0_i32 : i32, i32
  }
  func.func @transform_1(%arg0: i32) -> (i32, i32) {
    %c0_i32 = arith.constant 0 : i32
    %c0_i32_0 = arith.constant 0 : i32
    %c0_i32_1 = arith.constant 0 : i32
    return %c0_i32, %c0_i32_0 : i32, i32
  }
  func.func @transform_2(%arg0: i32) -> (i32, i32) {
    %c0_i32 = arith.constant 0 : i32
    %c0_i32_0 = arith.constant 0 : i32
    %c0_i32_1 = arith.constant 0 : i32
    return %c0_i32, %c0_i32_0 : i32, i32
  }
  func.func @transform_3(%arg0: i32) -> (i32, i32) {
    %c0_i32 = arith.constant 0 : i32
    %c0_i32_0 = arith.constant 0 : i32
    return %arg0, %c0_i32 : i32, i32
  }
}

</mosaic_0001>

<llo_original>
// kernel: tpu_custom_call.1
$region0: #{tpu_custom_call.1}
  #allocation0 [shape = 'u32[]', space=smem, size = 0x4, offset = 0x4, fixed_abs, tag = 'smem constant byte address 0x4 - core index']
  #allocation1 [shape = 'u32[144,128]{1,0:T(1,128)}', space=vmem, size = 0x12000, scoped, tag = 'internal scratch']
  %s0 = inlined_call_operand.vmem [shape: f32[8,32], index: 0, kind: input, shape index: {}]
  %s1 = inlined_call_operand.vmem [shape: f32[32,16], index: 1, kind: input, shape index: {}]
  %s2 = inlined_call_operand.vmem [shape: f32[1,16], index: 2, kind: input, shape index: {}]
  %s3 = inlined_call_operand.hbm [shape: f32[8,16], index: 3, kind: output, shape index: {}]
  %s4 = sld [smem:[#allocation0]]
  $region22: #{tpu_custom_call.1} parent=0
    _
  %s6 = ssub.s32 1, %s4
  %s7 = scalar_select 0, %s6, %s4
  $region1: #{tpu_custom_call.1} parent=0
    #allocation2 [shape = 'u8[4096]{0}', space=vmem, size = 0x1000, scoped, tag = 'output window, operand 0, single buffered']
    #allocation3 [shape = 's32[1]{0}', space=sflag, size = 0x4, scoped, tag = 'scoped memory for tpu_custom_call.1']
    %8 = vsyncpa [#allocation3], 0
    // Predicated region
    $region2: #{tpu_custom_call.1} parent=1 // pred_check
      _
    $region3: #{tpu_custom_call.1} parent=1 // pred_check_branch
      %10 = sbr.rel (0) target = $region5
    $region4: #{tpu_custom_call.1} parent=1 // pred_region
      _
    $region5: #{tpu_custom_call.1} parent=1 // pred_fallthru
      _
    // Predicated region
    $region6: #{tpu_custom_call.1} parent=1 // pred_check
      _
    $region7: #{tpu_custom_call.1} parent=1 // pred_check_branch
      %12 = sbr.rel (0) target = $region9
    $region8: #{tpu_custom_call.1} parent=1 // pred_region
      _
    $region9: #{tpu_custom_call.1} parent=1 // pred_fallthru
      _
    // Predicated region
    $region10: #{tpu_custom_call.1} parent=1 // pred_check
      _
    $region11: #{tpu_custom_call.1} parent=1 // pred_check_branch
      %14 = sbr.rel (0) target = $region13
    $region12: #{tpu_custom_call.1} parent=1 // pred_region
      _
    $region13: #{tpu_custom_call.1} parent=1 // pred_fallthru
      _
    %v15 = vld [vmem:[%s0] sm:$0xff]
    %v16 = vld [vmem:[%s1] sm:$0xff]
    %v17 = vld [vmem:[%s1 + $0x8] sm:$0xff]
    %v18 = vld [vmem:[%s1 + $0x10] sm:$0xff]
    %v19 = vld [vmem:[%s1 + $0x18] sm:$0xff]
    %v20 = vld [vmem:[%s2] sm:$0x1]
    %v22 = vlaneseq
    %v23 = vshrl.u32 %v22, 7
    %v24 = vsub.s32 0, %v23
    %v25 = vrot.slane %v20, %v24
    %vm27 = vcmask 261120
    %v29 = vsel %vm27, %v15, 0
    %31 = vmatprep.subr.mxu0 0.0
    %32 = vmatpush1.msra.mxu0 %v16
    %33 = vmatprep.subr.mxu0 0.0
    %34 = vmatpush1.msra.mxu0 %v17
    %35 = vmatprep.subr.mxu0 0.0
    %36 = vmatpush1.msra.mxu0 %v18
    %37 = vmatprep.subr.mxu0 0.0
    %38 = vmatpush1.msra.mxu0 %v19
    %39 = vmatprep.subr.mxu0 0.0
    %40 = vmatpush1.msra.mxu0 0.0
    %41 = vmatprep.subr.mxu0 0.0
    %42 = vmatpush1.msra.mxu0 0.0
    %43 = vmatprep.subr.mxu0 0.0
    %44 = vmatpush1.msra.mxu0 0.0
    %45 = vmatprep.subr.mxu0 0.0
    %46 = vmatpush1.msra.mxu0 0.0
    %47 = vmatprep.subr.mxu0 0.0
    %48 = vmatpush1.msra.mxu0 0.0
    %49 = vmatprep.subr.mxu0 0.0
    %50 = vmatpush1.msra.mxu0 0.0
    %51 = vmatprep.subr.mxu0 0.0
    %52 = vmatpush1.msra.mxu0 0.0
    %53 = vmatprep.subr.mxu0 0.0
    %54 = vmatpush1.msra.mxu0 0.0
    %55 = vmatprep.subr.mxu0 0.0
    %56 = vmatpush1.msra.mxu0 0.0
    %57 = vmatprep.subr.mxu0 0.0
    %58 = vmatpush1.msra.mxu0 0.0
    %59 = vmatprep.subr.mxu0 0.0
    %60 = vmatpush1.msra.mxu0 0.0
    %61 = vmatprep.subr.mxu0 0.0
    %62 = vmatpush1.msra.mxu0 0.0
    %63 = vmatprep.subr.mxu0 0.0
    %64 = vmatpush1.msra.mxu0 0.0
    %65 = vmatprep.subr.mxu0 0.0
    %66 = vmatpush1.msra.mxu0 0.0
    %67 = vmatprep.subr.mxu0 0.0
    %68 = vmatpush1.msra.mxu0 0.0
    %69 = vmatprep.subr.mxu0 0.0
    %70 = vmatpush1.msra.mxu0 0.0
    %71 = vmatprep.subr.mxu0 0.0
    %72 = vmatpush1.msra.mxu0 0.0
    %73 = vmatprep.subr.mxu0 0.0
    %74 = vmatpush1.msra.mxu0 0.0
    %75 = vmatprep.subr.mxu0 0.0
    %76 = vmatpush1.msra.mxu0 0.0
    %77 = vmatprep.subr.mxu0 0.0
    %78 = vmatpush1.msra.mxu0 0.0
    %79 = vmatprep.subr.mxu0 0.0
    %80 = vmatpush1.msra.mxu0 0.0
    %81 = vmatprep.subr.mxu0 0.0
    %82 = vmatpush1.msra.mxu0 0.0
    %83 = vmatprep.subr.mxu0 0.0
    %84 = vmatpush1.msra.mxu0 0.0
    %85 = vmatprep.subr.mxu0 0.0
    %86 = vmatpush1.msra.mxu0 0.0
    %87 = vmatprep.subr.mxu0 0.0
    %88 = vmatpush1.msra.mxu0 0.0
    %89 = vmatprep.subr.mxu0 0.0
    %90 = vmatpush1.msra.mxu0 0.0
    %91 = vmatprep.subr.mxu0 0.0
    %92 = vmatpush1.msra.mxu0 0.0
    %93 = vmatprep.subr.mxu0 0.0
    %94 = vmatpush1.msra.mxu0 0.0
    %95 = vmatprep.mubr.f32.mxu0 0.0
    %96 = vmatmul.mubr.f32.gmra.mrb[0].mxu0 %v29
    %v97 = vpop.f32.mrb[0].mxu0
    %v98 = vadd.f32 %v25, %v97
    %v99 = vpop.f32.mrb[0].mxu0
    %100 = vdwg.mxu0
    %vm101 = vcmask 130048
    %102 = vst.msk [vmem:[#allocation2] sm:$0xff] %vm101, %v98
    // Predicated region
    $region14: #{tpu_custom_call.1} parent=1 // pred_check
      _
    $region15: #{tpu_custom_call.1} parent=1 // pred_check_branch
      %104 = sbr.rel (0) target = $region17
    $region16: #{tpu_custom_call.1} parent=1 // pred_region
      %s106 = ssub.s32 128, 128
      %107 = vsyncadd [#allocation3], %s106
      %s109 = sshll.u32 [#allocation2], 4
      %s110 = int_to_ptr.vmem [resolvable:$true] %s109
      %112 = dma.vmem_to_hbm [thread:$0]  %s110, 128, %s3, [#allocation3]
    $region17: #{tpu_custom_call.1} parent=1 // pred_fallthru
      _
    // Predicated region
    $region18: #{tpu_custom_call.1} parent=1 // pred_check
      _
    $region19: #{tpu_custom_call.1} parent=1 // pred_check_branch
      %114 = sbr.rel (0) target = $region21
    $region20: #{tpu_custom_call.1} parent=1 // pred_region
      %115 = dma.done [#allocation3], 128
    $region21: #{tpu_custom_call.1} parent=1 // pred_fallthru
      _
    %116 = vsyncpa [#allocation3], 1

</llo_original>
